<compile_context>
chip_gen: v7x
topology: tpu7x:2x2x1
jax: 0.10.0
libtpu: 0.0.40
codegen_flags: <defaults>
</compile_context>

<pallas_src>
import functools

import jax
import jax.numpy as jnp
from jax.experimental import pallas as pl
from jax.experimental.pallas import tpu as pltpu

# ---------------- problem sizes (small, consistent with the module) ----------
B = 2      # batch
L = 16     # sequence length
H = 32     # hidden / model dim (channels of the SSM)
K = 4      # FIR taps of the shift kernel (d_kernel)


# ---------------- Pallas kernel ----------------------------------------------
def ssd_layer_kernel(u_ref, k_ref, w_ref, b_ref, o_ref, *, seq_len):
    """One row-chunk (whole sequences) per grid step.

    u_ref: (rows, Hp)  packed input rows (batch-major, seq-minor), lane-padded
    k_ref: (K, Hp)     per-channel causal FIR taps, lane-dense per tap
    w_ref: (Hp, Hp)    decoder weight, ALREADY transposed, bf16
    b_ref: (1, Hp)     decoder bias (f32)
    o_ref: (rows, Hp)  output rows (lane-dense)
    """
    u = u_ref[...]                    # (rows, Hp) f32
    k = k_ref[...]                    # (K, Hp)   f32
    w_t = w_ref[...]                  # (Hp, Hp)  bf16, pre-transposed
    bias = b_ref[...]                 # (1, Hp)   f32

    n_taps = k.shape[0]

    # --- causal per-channel FIR along the sequence axis (sublane rolls) ---
    # The roll wraps across sequence boundaries inside the packed slab, but those
    # wrapped rows are exactly the ones the causal mask zeroes out.
    row_in_seq = jax.lax.broadcasted_iota(jnp.int32, u.shape, 0) % seq_len
    acc = u * k[0, :]
    for j in range(1, n_taps):        # K is small & static -> unrolled
        shifted = pltpu.roll(u, shift=j, axis=0)          # shifted[i] = u[i-j] (cyclic)
        acc = acc + jnp.where(row_in_seq >= j, shifted, 0.0) * k[j, :]

    # --- dense decoder: bf16 MXU matmul, f32 accumulate + fused bias & skip ---
    y = jnp.dot(acc.astype(jnp.bfloat16), w_t, preferred_element_type=jnp.float32)
    o_ref[...] = (y + (u + bias)).astype(o_ref.dtype)


# ---------------- wrapper -----------------------------------------------------
def ssd_layer(u, fir_k, dec_w, dec_b, *, target_rows_per_block=1024):
    """u: (B, L, H) float32 -> (B, L, H) float32."""
    Bb, Ll, Hh = u.shape
    Kk = fir_k.shape[-1]

    # Lane-pad the hidden dim to a multiple of 128 so every store is unmasked.
    Hp = max(128, ((Hh + 127) // 128) * 128)
    pad_h = Hp - Hh

    # Row-chunk tiling: pick the largest number of WHOLE sequences per block such
    # that rows_per_block <= target (and it divides B).  At the toy size this is
    # a single grid step; at realistic sizes it yields ~512-1024-row tiles.
    BBk = 1
    for d in range(1, Bb + 1):
        if Bb % d == 0 and d * Ll <= target_rows_per_block:
            BBk = d
    rows_per_block = BBk * Ll
    rows_total = Bb * Ll
    n_blocks = Bb // BBk
    # (8,128) constraint: second-to-last block dim must be 8-divisible or full.
    assert rows_per_block % 8 == 0 or n_blocks == 1, \
        "rows per block must be a multiple of 8 (or a single block)"
    # Roll-wrap trick requires batch-major / seq-minor packing of whole sequences.
    assert rows_per_block % Ll == 0

    # Pack rows (layout-preserving C-order merge of (B, L)) and zero-pad lanes.
    u2 = jnp.pad(u.reshape(rows_total, Hh), ((0, 0), (0, pad_h)))        # (rows, Hp)
    k_t = jnp.pad(fir_k.T, ((0, 0), (0, pad_h)))                          # (K, Hp)
    w_t = jnp.pad(dec_w.T, ((0, pad_h), (0, pad_h))).astype(jnp.bfloat16) # (Hp, Hp)
    b2 = jnp.pad(dec_b.reshape(1, Hh), ((0, 0), (0, pad_h)))              # (1, Hp)

    cost = pl.CostEstimate(
        flops=2 * rows_total * Hp * Hp + 2 * rows_total * Hp * Kk,
        transcendentals=0,
        bytes_accessed=2 * rows_total * Hp * 4 + Hp * Hp * 2 + Kk * Hp * 4 + Hp * 4,
    )

    out2 = pl.pallas_call(
        functools.partial(ssd_layer_kernel, seq_len=Ll),
        out_shape=jax.ShapeDtypeStruct((rows_total, Hp), u.dtype),
        grid_spec=pltpu.PrefetchScalarGridSpec(
            num_scalar_prefetch=0,
            grid=(n_blocks,),
            in_specs=[
                pl.BlockSpec((rows_per_block, Hp), lambda b: (b, 0)),   # packed input rows
                pl.BlockSpec((Kk, Hp),             lambda b: (0, 0)),   # FIR taps (resident)
                pl.BlockSpec((Hp, Hp),             lambda b: (0, 0)),   # decoder weight^T (resident)
                pl.BlockSpec((1, Hp),              lambda b: (0, 0)),   # decoder bias (resident)
            ],
            out_specs=pl.BlockSpec((rows_per_block, Hp), lambda b: (b, 0)),
        ),
        compiler_params=pltpu.CompilerParams(
            dimension_semantics=("parallel",),
            vmem_limit_bytes=32 * 1024 * 1024,
        ),
        cost_estimate=cost,
    )(u2, k_t, w_t, b2)

    return out2[:, :Hh].reshape(Bb, Ll, Hh)


# ---------------- pure-JAX reference (matches PyTorch semantics) -------------
def ssd_layer_ref(u, fir_k, dec_w, dec_b):
    Bb, Ll, Hh = u.shape
    v = jnp.transpose(u, (0, 2, 1))                        # b l h -> b h l
    y = jnp.zeros_like(v)
    for j in range(fir_k.shape[1]):
        shifted = jnp.pad(v[:, :, :Ll - j], ((0, 0), (0, 0), (j, 0)))
        y = y + shifted * fir_k[None, :, j:j + 1]
    y = jnp.transpose(y, (0, 2, 1))                        # b h l -> b l h
    y = y @ dec_w.T + dec_b                                # dense decoder
    return y + u                                           # skip connection


# ---------------- main --------------------------------------------------------
if __name__ == "__main__":
    key = jax.random.PRNGKey(0)
    ku, kk, kw, kb = jax.random.split(key, 4)

    u = jax.random.normal(ku, (B, L, H), dtype=jnp.float32)

    # Deterministic "parameters" (synthetic init, no checkpoint load):
    fir_k = 0.1 * jax.random.normal(kk, (H, K), dtype=jnp.float32)   # shift-kernel taps
    dec_w = (1.0 / jnp.sqrt(H)) * jax.random.normal(kw, (H, H), dtype=jnp.float32)
    dec_b = 0.01 * jax.random.normal(kb, (H,), dtype=jnp.float32)

    out = ssd_layer(u, fir_k, dec_w, dec_b)
    out = jax.block_until_ready(out)

    ref = ssd_layer_ref(u, fir_k, dec_w, dec_b)
    assert out.shape == (B, L, H)
    # Tolerance accounts for the bf16 matmul inputs (f32 accumulation).
    assert jnp.allclose(out, ref, atol=1e-2, rtol=1e-2), "mismatch vs reference"

    # Also exercise the multi-block (row-chunk) grid path for correctness.
    out_rb = jax.block_until_ready(
        ssd_layer(u, fir_k, dec_w, dec_b, target_rows_per_block=L))
    assert jnp.allclose(out_rb, ref, atol=1e-2, rtol=1e-2), "mismatch vs reference (row-chunk grid)"

    # TODO(synk): closed_loop / inference_only recurrent rollout path of the full
    # SpaceTime SSDLayer (state feedback) is not represented here; only the
    # convolutional-form forward pass is implemented.
    print("KERNEL_OK")
</pallas_src>

<mosaic_0001>
module attributes {stable_mosaic.version = 11 : i64} {
  func.func @ssd_layer_kernel(%arg0: i32, %arg1: memref<32x128xf32, #tpu.memory_space<vmem>>, %arg2: memref<4x128xf32, #tpu.memory_space<vmem>>, %arg3: memref<128x128xbf16, #tpu.memory_space<vmem>>, %arg4: memref<1x128xf32, #tpu.memory_space<vmem>>, %arg5: memref<32x128xf32, #tpu.memory_space<vmem>>) attributes {dimension_semantics = [#tpu.dimension_semantics<parallel>], iteration_bounds = array<i64: 1>, scalar_prefetch = 0 : i64, scratch_operands = 0 : i64, tpu.core_type = #tpu.core_type<tc>, window_params = [{transform_indices = @transform_0, window_bounds = array<i64: 32, 128>}, {pipeline_mode = #tpu.pipeline_mode<synchronous>, transform_indices = @transform_1, window_bounds = array<i64: 4, 128>}, {pipeline_mode = #tpu.pipeline_mode<synchronous>, transform_indices = @transform_2, window_bounds = array<i64: 128, 128>}, {pipeline_mode = #tpu.pipeline_mode<synchronous>, transform_indices = @transform_3, window_bounds = array<i64: 1, 128>}, {transform_indices = @transform_4, window_bounds = array<i64: 32, 128>}]} {
    %c0 = arith.constant 0 : index
    %c0_0 = arith.constant 0 : index
    %0 = vector.load %arg1[%c0, %c0_0] : memref<32x128xf32, #tpu.memory_space<vmem>>, vector<32x128xf32>
    %c0_1 = arith.constant 0 : index
    %c0_2 = arith.constant 0 : index
    %1 = vector.load %arg2[%c0_1, %c0_2] : memref<4x128xf32, #tpu.memory_space<vmem>>, vector<4x128xf32>
    %c0_3 = arith.constant 0 : index
    %c0_4 = arith.constant 0 : index
    %2 = vector.load %arg3[%c0_3, %c0_4] : memref<128x128xbf16, #tpu.memory_space<vmem>>, vector<128x128xbf16>
    %c0_5 = arith.constant 0 : index
    %c0_6 = arith.constant 0 : index
    %3 = vector.load %arg4[%c0_5, %c0_6] : memref<1x128xf32, #tpu.memory_space<vmem>>, vector<1x128xf32>
    %4 = tpu.iota {dimensions = array<i32: 0>} : vector<32x128xi32>
    %c16_i32 = arith.constant 16 : i32
    %c0_i32 = arith.constant 0 : i32
    %5 = arith.cmpi eq, %c16_i32, %c0_i32 : i32
    %c1_i32 = arith.constant 1 : i32
    %6 = arith.select %5, %c1_i32, %c16_i32 : i32
    %7 = vector.broadcast %6 : i32 to vector<32x128xi32>
    %8 = arith.remsi %4, %7 : vector<32x128xi32>
    %c0_i32_7 = arith.constant 0 : i32
    %9 = vector.broadcast %c0_i32_7 : i32 to vector<32x128xi32>
    %10 = arith.cmpi ne, %8, %9 : vector<32x128xi32>
    %c0_i32_8 = arith.constant 0 : i32
    %11 = vector.broadcast %c0_i32_8 : i32 to vector<32x128xi32>
    %12 = arith.cmpi slt, %8, %11 : vector<32x128xi32>
    %c0_i32_9 = arith.constant 0 : i32
    %13 = arith.cmpi slt, %6, %c0_i32_9 : i32
    %14 = vector.broadcast %13 : i1 to vector<32x128xi1>
    %15 = vector.broadcast %14 : vector<32x128xi1> to vector<32x128xi1>
    %16 = arith.xori %12, %15 : vector<32x128xi1>
    %17 = arith.andi %16, %10 : vector<32x128xi1>
    %18 = vector.broadcast %6 : i32 to vector<32x128xi32>
    %19 = arith.addi %8, %18 : vector<32x128xi32>
    %20 = arith.select %17, %19, %8 : vector<32x128xi1>, vector<32x128xi32>
    %21 = vector.extract_strided_slice %1 {offsets = [0, 0], sizes = [1, 128], strides = [1, 1]} : vector<4x128xf32> to vector<1x128xf32>
    %22 = vector.shape_cast %21 : vector<1x128xf32> to vector<128xf32>
    %23 = vector.shape_cast %22 : vector<128xf32> to vector<1x128xf32>
    %24 = vector.broadcast %23 : vector<1x128xf32> to vector<32x128xf32>
    %25 = arith.mulf %0, %24 : vector<32x128xf32>
    %c1_i32_10 = arith.constant 1 : i32
    %26 = tpu.dynamic_rotate %0 by %c1_i32_10 dim 0 : vector<32x128xf32>, i32 -> vector<32x128xf32>
    %c1_i32_11 = arith.constant 1 : i32
    %27 = vector.broadcast %c1_i32_11 : i32 to vector<32x128xi32>
    %28 = arith.cmpi sge, %20, %27 : vector<32x128xi32>
    %cst = arith.constant 0.000000e+00 : f32
    %29 = vector.broadcast %cst : f32 to vector<32x128xf32>
    %30 = arith.select %28, %26, %29 : vector<32x128xi1>, vector<32x128xf32>
    %31 = vector.extract_strided_slice %1 {offsets = [1, 0], sizes = [1, 128], strides = [1, 1]} : vector<4x128xf32> to vector<1x128xf32>
    %32 = vector.shape_cast %31 : vector<1x128xf32> to vector<128xf32>
    %33 = vector.shape_cast %32 : vector<128xf32> to vector<1x128xf32>
    %34 = vector.broadcast %33 : vector<1x128xf32> to vector<32x128xf32>
    %35 = arith.mulf %30, %34 : vector<32x128xf32>
    %36 = arith.addf %25, %35 : vector<32x128xf32>
    %c2_i32 = arith.constant 2 : i32
    %37 = tpu.dynamic_rotate %0 by %c2_i32 dim 0 : vector<32x128xf32>, i32 -> vector<32x128xf32>
    %c2_i32_12 = arith.constant 2 : i32
    %38 = vector.broadcast %c2_i32_12 : i32 to vector<32x128xi32>
    %39 = arith.cmpi sge, %20, %38 : vector<32x128xi32>
    %cst_13 = arith.constant 0.000000e+00 : f32
    %40 = vector.broadcast %cst_13 : f32 to vector<32x128xf32>
    %41 = arith.select %39, %37, %40 : vector<32x128xi1>, vector<32x128xf32>
    %42 = vector.extract_strided_slice %1 {offsets = [2, 0], sizes = [1, 128], strides = [1, 1]} : vector<4x128xf32> to vector<1x128xf32>
    %43 = vector.shape_cast %42 : vector<1x128xf32> to vector<128xf32>
    %44 = vector.shape_cast %43 : vector<128xf32> to vector<1x128xf32>
    %45 = vector.broadcast %44 : vector<1x128xf32> to vector<32x128xf32>
    %46 = arith.mulf %41, %45 : vector<32x128xf32>
    %47 = arith.addf %36, %46 : vector<32x128xf32>
    %c3_i32 = arith.constant 3 : i32
    %48 = tpu.dynamic_rotate %0 by %c3_i32 dim 0 : vector<32x128xf32>, i32 -> vector<32x128xf32>
    %c3_i32_14 = arith.constant 3 : i32
    %49 = vector.broadcast %c3_i32_14 : i32 to vector<32x128xi32>
    %50 = arith.cmpi sge, %20, %49 : vector<32x128xi32>
    %cst_15 = arith.constant 0.000000e+00 : f32
    %51 = vector.broadcast %cst_15 : f32 to vector<32x128xf32>
    %52 = arith.select %50, %48, %51 : vector<32x128xi1>, vector<32x128xf32>
    %53 = vector.extract_strided_slice %1 {offsets = [3, 0], sizes = [1, 128], strides = [1, 1]} : vector<4x128xf32> to vector<1x128xf32>
    %54 = vector.shape_cast %53 : vector<1x128xf32> to vector<128xf32>
    %55 = vector.shape_cast %54 : vector<128xf32> to vector<1x128xf32>
    %56 = vector.broadcast %55 : vector<1x128xf32> to vector<32x128xf32>
    %57 = arith.mulf %52, %56 : vector<32x128xf32>
    %58 = arith.addf %47, %57 : vector<32x128xf32>
    %59 = arith.truncf %58 : vector<32x128xf32> to vector<32x128xbf16>
    %cst_16 = arith.constant dense<0.000000e+00> : vector<32x128xf32>
    %60 = tpu.matmul %59, %2, %cst_16 {dimension_numbers = #tpu.dot_dimension_numbers<[1], [0], [0], [1], [0, 0, 1, 1], [], []>} : vector<32x128xbf16>, vector<128x128xbf16>, vector<32x128xf32> -> vector<32x128xf32>
    %61 = vector.broadcast %3 : vector<1x128xf32> to vector<32x128xf32>
    %62 = arith.addf %0, %61 : vector<32x128xf32>
    %63 = arith.addf %60, %62 : vector<32x128xf32>
    %c0_17 = arith.constant 0 : index
    %c0_18 = arith.constant 0 : index
    %64 = vector.load %arg5[%c0_17, %c0_18] : memref<32x128xf32, #tpu.memory_space<vmem>>, vector<32x128xf32>
    tpu.vector_store %arg5[%c0_17, %c0_18], %63 {strides = array<i32>} : memref<32x128xf32, #tpu.memory_space<vmem>>, vector<32x128xf32>,
    return
  }
  func.func @transform_0(%arg0: i32) -> (i32, i32) {
    %c0_i32 = arith.constant 0 : i32
    %c0_i32_0 = arith.constant 0 : i32
    return %arg0, %c0_i32 : i32, i32
  }
  func.func @transform_1(%arg0: i32) -> (i32, i32) {
    %c0_i32 = arith.constant 0 : i32
    %c0_i32_0 = arith.constant 0 : i32
    %c0_i32_1 = arith.constant 0 : i32
    return %c0_i32, %c0_i32_0 : i32, i32
  }
  func.func @transform_2(%arg0: i32) -> (i32, i32) {
    %c0_i32 = arith.constant 0 : i32
    %c0_i32_0 = arith.constant 0 : i32
    %c0_i32_1 = arith.constant 0 : i32
    return %c0_i32, %c0_i32_0 : i32, i32
  }
  func.func @transform_3(%arg0: i32) -> (i32, i32) {
    %c0_i32 = arith.constant 0 : i32
    %c0_i32_0 = arith.constant 0 : i32
    %c0_i32_1 = arith.constant 0 : i32
    return %c0_i32, %c0_i32_0 : i32, i32
  }
  func.func @transform_4(%arg0: i32) -> (i32, i32) {
    %c0_i32 = arith.constant 0 : i32
    %c0_i32_0 = arith.constant 0 : i32
    return %arg0, %c0_i32 : i32, i32
  }
}

</mosaic_0001>

<llo_original>
// kernel: tpu_custom_call.1
$region0: #{tpu_custom_call.1}
  #allocation0 [shape = 'u32[]', space=smem, size = 0x4, offset = 0x4, fixed_abs, tag = 'smem constant byte address 0x4 - core index']
  #allocation1 [shape = 'u32[144,128]{1,0:T(1,128)}', space=vmem, size = 0x12000, scoped, tag = 'internal scratch']
  %s0 = inlined_call_operand.hbm [shape: f32[32,128], index: 0, kind: input, shape index: {}]
  %s1 = inlined_call_operand.hbm [shape: f32[4,128], index: 1, kind: input, shape index: {}]
  %s2 = inlined_call_operand.hbm [shape: bf16[128,128], index: 2, kind: input, shape index: {}]
  %s3 = inlined_call_operand.vmem [shape: f32[1,128], index: 3, kind: input, shape index: {}]
  %s4 = inlined_call_operand.hbm [shape: f32[32,128], index: 4, kind: output, shape index: {}]
  %s5 = sld [smem:[#allocation0]]
  $region38: #{tpu_custom_call.1} parent=0
    _
  %s7 = ssub.s32 1, %s5
  %s8 = scalar_select 0, %s7, %s5
  $region1: #{tpu_custom_call.1} parent=0
    #allocation2 [shape = 'u8[16384]{0}', space=vmem, size = 0x4000, scoped, tag = 'input window, operand 0, single buffered']
    #allocation3 [shape = 's32[1]{0}', space=sflag, size = 0x4, scoped, tag = 'scoped memory for tpu_custom_call.1']
    #allocation4 [shape = 's32[1]{0}', space=sflag, size = 0x4, scoped, tag = 'scoped memory for tpu_custom_call.1']
    #allocation5 [shape = 'u8[2048]{0}', space=vmem, size = 0x800, scoped, tag = 'input window, operand 1, single buffered']
    #allocation6 [shape = 's32[1]{0}', space=sflag, size = 0x4, scoped, tag = 'scoped memory for tpu_custom_call.1']
    #allocation7 [shape = 'u8[32768]{0}', space=vmem, size = 0x8000, scoped, tag = 'input window, operand 2, single buffered']
    #allocation8 [shape = 'u8[16384]{0}', space=vmem, size = 0x4000, scoped, tag = 'output window, operand 0, single buffered']
    %9 = vsyncpa [#allocation3], 0
    %10 = vsyncpa [#allocation6], 0
    %11 = vsyncpa [#allocation4], 0
    // Predicated region
    $region2: #{tpu_custom_call.1} parent=1 // pred_check
      _
    $region3: #{tpu_custom_call.1} parent=1 // pred_check_branch
      %13 = sbr.rel (0) target = $region5
    $region4: #{tpu_custom_call.1} parent=1 // pred_region
      %s15 = ssub.s32 512, 512
      %16 = vsyncadd [#allocation3], %s15
      %s17 = sshll.u32 [#allocation2], 4
      %s18 = int_to_ptr.vmem [resolvable:$true] %s17
      %23 = dma.hbm_to_vmem [thread:$0]  %s0, 512, %s18, [#allocation3], 128, 128, 8
    $region5: #{tpu_custom_call.1} parent=1 // pred_fallthru
      _
    // Predicated region
    $region6: #{tpu_custom_call.1} parent=1 // pred_check
      _
    $region7: #{tpu_custom_call.1} parent=1 // pred_check_branch
      %25 = sbr.rel (0) target = $region9
    $region8: #{tpu_custom_call.1} parent=1 // pred_region
      %s27 = ssub.s32 64, 64
      %28 = vsyncadd [#allocation6], %s27
      %s30 = sshll.u32 [#allocation5], 4
      %s31 = int_to_ptr.vmem [resolvable:$true] %s30
      %33 = dma.hbm_to_vmem [thread:$0]  %s1, 64, %s31, [#allocation6]
    $region9: #{tpu_custom_call.1} parent=1 // pred_fallthru
      _
    // Predicated region
    $region10: #{tpu_custom_call.1} parent=1 // pred_check
      _
    $region11: #{tpu_custom_call.1} parent=1 // pred_check_branch
      %35 = sbr.rel (0) target = $region13
    $region12: #{tpu_custom_call.1} parent=1 // pred_region
      %s37 = ssub.s32 1024, 1024
      %38 = vsyncadd [#allocation6], %s37
      %s39 = sshll.u32 [#allocation7], 4
      %s40 = int_to_ptr.vmem [resolvable:$true] %s39
      %45 = dma.hbm_to_vmem [thread:$0]  %s2, 1024, %s40, [#allocation6], 64, 64, 4
    $region13: #{tpu_custom_call.1} parent=1 // pred_fallthru
      _
    // Predicated region
    $region14: #{tpu_custom_call.1} parent=1 // pred_check
      _
    $region15: #{tpu_custom_call.1} parent=1 // pred_check_branch
      %47 = sbr.rel (0) target = $region17
    $region16: #{tpu_custom_call.1} parent=1 // pred_region
      _
    $region17: #{tpu_custom_call.1} parent=1 // pred_fallthru
      _
    // Predicated region
    $region18: #{tpu_custom_call.1} parent=1 // pred_check
      _
    $region19: #{tpu_custom_call.1} parent=1 // pred_check_branch
      %49 = sbr.rel (0) target = $region21
    $region20: #{tpu_custom_call.1} parent=1 // pred_region
      %50 = dma.done [#allocation3], 512
    $region21: #{tpu_custom_call.1} parent=1 // pred_fallthru
      _
    // Predicated region
    $region22: #{tpu_custom_call.1} parent=1 // pred_check
      _
    $region23: #{tpu_custom_call.1} parent=1 // pred_check_branch
      %52 = sbr.rel (0) target = $region25
    $region24: #{tpu_custom_call.1} parent=1 // pred_region
      %53 = dma.done [#allocation6], 64
    $region25: #{tpu_custom_call.1} parent=1 // pred_fallthru
      _
    // Predicated region
    $region26: #{tpu_custom_call.1} parent=1 // pred_check
      _
    $region27: #{tpu_custom_call.1} parent=1 // pred_check_branch
      %55 = sbr.rel (0) target = $region29
    $region28: #{tpu_custom_call.1} parent=1 // pred_region
      %56 = dma.done [#allocation6], 1024
    $region29: #{tpu_custom_call.1} parent=1 // pred_fallthru
      _
    %v58 = vld [vmem:[#allocation2] sm:$0xff]
    %v59 = vld [vmem:[#allocation2 + $0x8] sm:$0xff]
    %v60 = vld [vmem:[#allocation2 + $0x10] sm:$0xff]
    %v61 = vld [vmem:[#allocation2 + $0x18] sm:$0xff]
    %v62 = vld [vmem:[#allocation5] sm:$0xf]
    %v63 = vld [vmem:[#allocation7] sm:$0xf]
    %v64 = vld [vmem:[#allocation7 + $0x4] sm:$0xf]
    %v65 = vld [vmem:[#allocation7 + $0x8] sm:$0xf]
    %v66 = vld [vmem:[#allocation7 + $0xc] sm:$0xf]
    %v67 = vld [vmem:[#allocation7 + $0x10] sm:$0xf]
    %v68 = vld [vmem:[#allocation7 + $0x14] sm:$0xf]
    %v69 = vld [vmem:[#allocation7 + $0x18] sm:$0xf]
    %v70 = vld [vmem:[#allocation7 + $0x1c] sm:$0xf]
    %v71 = vld [vmem:[#allocation7 + $0x20] sm:$0xf]
    %v72 = vld [vmem:[#allocation7 + $0x24] sm:$0xf]
    %v73 = vld [vmem:[#allocation7 + $0x28] sm:$0xf]
    %v74 = vld [vmem:[#allocation7 + $0x2c] sm:$0xf]
    %v75 = vld [vmem:[#allocation7 + $0x30] sm:$0xf]
    %v76 = vld [vmem:[#allocation7 + $0x34] sm:$0xf]
    %v77 = vld [vmem:[#allocation7 + $0x38] sm:$0xf]
    %v78 = vld [vmem:[#allocation7 + $0x3c] sm:$0xf]
    %v79 = vld [vmem:[%s3] sm:$0x1]
    %v80 = vlaneseq
    %v81 = vshrl.u32 %v80, 7
    %v82 = vadd.s32 %v81, 8
    %v83 = vadd.s32 %v81, 16
    %v84 = vadd.s32 %v81, 24
    %vm85 = vcmp.lt.s32.totalorder %v81, 0
    %v86 = vsub.s32 0, %v81
    %v87 = vsel %vm85, %v86, %v81
    %v88 = vshrl.u32 %v87, 4
    %v89 = vand.u32 %v87, 15
    %v90 = vsub.s32 0, %v89
    %v91 = vsel %vm85, %v90, %v89
    %vm92 = vcmp.lt.s32.totalorder %v82, 0
    %v93 = vsub.s32 0, %v82
    %v94 = vsel %vm92, %v93, %v82
    %v95 = vshrl.u32 %v94, 4
    %v96 = vand.u32 %v94, 15
    %v97 = vsub.s32 0, %v96
    %v98 = vsel %vm92, %v97, %v96
    %vm99 = vcmp.lt.s32.totalorder %v83, 0
    %v100 = vsub.s32 0, %v83
    %v101 = vsel %vm99, %v100, %v83
    %v102 = vshrl.u32 %v101, 4
    %v103 = vand.u32 %v101, 15
    %v104 = vsub.s32 0, %v103
    %v105 = vsel %vm99, %v104, %v103
    %vm106 = vcmp.lt.s32.totalorder %v84, 0
    %v107 = vsub.s32 0, %v84
    %v108 = vsel %vm106, %v107, %v84
    %v109 = vshrl.u32 %v108, 4
    %v110 = vand.u32 %v108, 15
    %v111 = vsub.s32 0, %v110
    %v112 = vsel %vm106, %v111, %v110
    %vm113 = vcmp.ne.s32.totalorder %v91, 0
    %vm114 = vcmp.ne.s32.totalorder %v98, 0
    %vm115 = vcmp.ne.s32.totalorder %v105, 0
    %vm116 = vcmp.ne.s32.totalorder %v112, 0
    %vm117 = vcmp.lt.s32.totalorder %v91, 0
    %vm118 = vcmp.lt.s32.totalorder %v98, 0
    %vm119 = vcmp.lt.s32.totalorder %v105, 0
    %vm120 = vcmp.lt.s32.totalorder %v112, 0
    %vm121 = vmand %vm117, %vm113
    %vm122 = vmand %vm118, %vm114
    %vm123 = vmand %vm119, %vm115
    %vm124 = vmand %vm120, %vm116
    %v125 = vadd.s32 %v91, 16
    %v126 = vadd.s32 %v98, 16
    %v127 = vadd.s32 %v105, 16
    %v128 = vadd.s32 %v112, 16
    %v129 = vsel %vm121, %v125, %v91
    %v130 = vsel %vm122, %v126, %v98
    %v131 = vsel %vm123, %v127, %v105
    %v132 = vsel %vm124, %v128, %v112
    %v133 = vlaneseq
    %v134 = vshrl.u32 %v133, 7
    %v135 = vsub.s32 0, %v134
    %v136 = vrot.slane %v62, %v135
    %v137 = vmul.f32 %v58, %v136
    %v138 = vmul.f32 %v59, %v136
    %v139 = vmul.f32 %v60, %v136
    %v140 = vmul.f32 %v61, %v136
    %v141 = vrot.slane %v58, 7
    %v142 = vrot.slane %v59, 7
    %v143 = vrot.slane %v60, 7
    %v144 = vrot.slane %v61, 7
    %vm145 = vcmp.lt.s32.totalorder %v81, 1
    %v146 = vsel %vm145, %v143, %v144
    %v147 = vsel %vm145, %v142, %v143
    %v148 = vsel %vm145, %v141, %v142
    %v149 = vsel %vm145, %v144, %v141
    %vm150 = vcmp.ge.s32.totalorder %v129, 1
    %vm151 = vcmp.ge.s32.totalorder %v130, 1
    %vm152 = vcmp.ge.s32.totalorder %v131, 1
    %vm153 = vcmp.ge.s32.totalorder %v132, 1
    %v154 = vsel %vm150, %v149, 0.0
    %v155 = vsel %vm151, %v148, 0.0
    %v156 = vsel %vm152, %v147, 0.0
    %v157 = vsel %vm153, %v146, 0.0
    %v158 = vlaneseq
    %v159 = vshrl.u32 %v158, 7
    %v160 = vsub.s32 1, %v159
    %v161 = vrot.slane %v62, %v160
    %v162 = vmul.f32 %v154, %v161
    %v163 = vmul.f32 %v155, %v161
    %v164 = vmul.f32 %v156, %v161
    %v165 = vmul.f32 %v157, %v161
    %v166 = vadd.f32 %v137, %v162
    %v167 = vadd.f32 %v138, %v163
    %v168 = vadd.f32 %v139, %v164
    %v169 = vadd.f32 %v140, %v165
    %v170 = vrot.slane %v58, 6
    %v171 = vrot.slane %v59, 6
    %v172 = vrot.slane %v60, 6
    %v173 = vrot.slane %v61, 6
    %vm174 = vcmp.lt.s32.totalorder %v81, 2
    %v175 = vsel %vm174, %v172, %v173
    %v176 = vsel %vm174, %v171, %v172
    %v177 = vsel %vm174, %v170, %v171
    %v178 = vsel %vm174, %v173, %v170
    %vm179 = vcmp.ge.s32.totalorder %v129, 2
    %vm180 = vcmp.ge.s32.totalorder %v130, 2
    %vm181 = vcmp.ge.s32.totalorder %v131, 2
    %vm182 = vcmp.ge.s32.totalorder %v132, 2
    %v183 = vsel %vm179, %v178, 0.0
    %v184 = vsel %vm180, %v177, 0.0
    %v185 = vsel %vm181, %v176, 0.0
    %v186 = vsel %vm182, %v175, 0.0
    %v187 = vlaneseq
    %v188 = vshrl.u32 %v187, 7
    %v189 = vsub.s32 2, %v188
    %v190 = vrot.slane %v62, %v189
    %v191 = vmul.f32 %v183, %v190
    %v192 = vmul.f32 %v184, %v190
    %v193 = vmul.f32 %v185, %v190
    %v194 = vmul.f32 %v186, %v190
    %v195 = vadd.f32 %v166, %v191
    %v196 = vadd.f32 %v167, %v192
    %v197 = vadd.f32 %v168, %v193
    %v198 = vadd.f32 %v169, %v194
    %v199 = vrot.slane %v58, 5
    %v200 = vrot.slane %v59, 5
    %v201 = vrot.slane %v60, 5
    %v202 = vrot.slane %v61, 5
    %vm203 = vcmp.lt.s32.totalorder %v81, 3
    %v204 = vsel %vm203, %v201, %v202
    %v205 = vsel %vm203, %v200, %v201
    %v206 = vsel %vm203, %v199, %v200
    %v207 = vsel %vm203, %v202, %v199
    %vm208 = vcmp.ge.s32.totalorder %v129, 3
    %vm209 = vcmp.ge.s32.totalorder %v130, 3
    %vm210 = vcmp.ge.s32.totalorder %v131, 3
    %vm211 = vcmp.ge.s32.totalorder %v132, 3
    %v212 = vsel %vm208, %v207, 0.0
    %v213 = vsel %vm209, %v206, 0.0
    %v214 = vsel %vm210, %v205, 0.0
    %v215 = vsel %vm211, %v204, 0.0
    %v216 = vlaneseq
    %v217 = vshrl.u32 %v216, 7
    %v218 = vsub.s32 3, %v217
    %v219 = vrot.slane %v62, %v218
    %v220 = vmul.f32 %v212, %v219
    %v221 = vmul.f32 %v213, %v219
    %v222 = vmul.f32 %v214, %v219
    %v223 = vmul.f32 %v215, %v219
    %v224 = vadd.f32 %v195, %v220
    %v225 = vadd.f32 %v196, %v221
    %v226 = vadd.f32 %v197, %v222
    %v227 = vadd.f32 %v198, %v223
    %v228 = vpack.c.bf16 %v225, %v224
    %v229 = vpack.c.bf16 %v227, %v226
    %v231 = vlaneseq
    %v232 = vshrl.u32 %v231, 7
    %v233 = vsub.s32 0, %v232
    %v234 = vrot.slane %v79, %v233
    %v236 = vadd.f32 %v58, %v234
    %v237 = vadd.f32 %v59, %v234
    %v238 = vadd.f32 %v60, %v234
    %v239 = vadd.f32 %v61, %v234
    %v256 = vunpack.c.l.b16 %v63
    %v257 = vunpack.c.l.b16 %v64
    %v258 = vunpack.c.l.b16 %v65
    %v259 = vunpack.c.l.b16 %v66
    %v260 = vunpack.c.l.b16 %v67
    %v261 = vunpack.c.l.b16 %v68
    %v262 = vunpack.c.l.b16 %v69
    %v263 = vunpack.c.l.b16 %v70
    %v264 = vunpack.c.l.b16 %v71
    %v265 = vunpack.c.l.b16 %v72
    %v266 = vunpack.c.l.b16 %v73
    %v267 = vunpack.c.l.b16 %v74
    %v268 = vunpack.c.l.b16 %v75
    %v269 = vunpack.c.l.b16 %v76
    %v270 = vunpack.c.l.b16 %v77
    %v271 = vunpack.c.l.b16 %v78
    %v272 = vpack.c.b16 %v257, %v256
    %v273 = vpack.c.b16 %v259, %v258
    %v274 = vpack.c.b16 %v261, %v260
    %v275 = vpack.c.b16 %v263, %v262
    %v276 = vpack.c.b16 %v265, %v264
    %v277 = vpack.c.b16 %v267, %v266
    %v278 = vpack.c.b16 %v269, %v268
    %v279 = vpack.c.b16 %v271, %v270
    %288 = vmatprep.subr.bf16.mxu0 0
    %289 = vmatpush1.bf16.msra.mxu0 %v272
    %290 = vmatprep.subr.bf16.mxu0 0
    %291 = vmatpush1.bf16.msra.mxu0 %v273
    %292 = vmatprep.subr.bf16.mxu0 0
    %293 = vmatpush1.bf16.msra.mxu0 %v274
    %294 = vmatprep.subr.bf16.mxu0 0
    %295 = vmatpush1.bf16.msra.mxu0 %v275
    %296 = vmatprep.subr.bf16.mxu0 0
    %297 = vmatpush1.bf16.msra.mxu0 %v276
    %298 = vmatprep.subr.bf16.mxu0 0
    %299 = vmatpush1.bf16.msra.mxu0 %v277
    %300 = vmatprep.subr.bf16.mxu0 0
    %301 = vmatpush1.bf16.msra.mxu0 %v278
    %302 = vmatprep.subr.bf16.mxu0 0
    %303 = vmatpush1.bf16.msra.mxu0 %v279
    %304 = vmatprep.subr.bf16.mxu0 0
    %305 = vmatpush1.bf16.msra.mxu0 0
    %306 = vmatprep.subr.bf16.mxu0 0
    %307 = vmatpush1.bf16.msra.mxu0 0
    %308 = vmatprep.subr.bf16.mxu0 0
    %309 = vmatpush1.bf16.msra.mxu0 0
    %310 = vmatprep.subr.bf16.mxu0 0
    %311 = vmatpush1.bf16.msra.mxu0 0
    %312 = vmatprep.subr.bf16.mxu0 0
    %313 = vmatpush1.bf16.msra.mxu0 0
    %314 = vmatprep.subr.bf16.mxu0 0
    %315 = vmatpush1.bf16.msra.mxu0 0
    %316 = vmatprep.subr.bf16.mxu0 0
    %317 = vmatpush1.bf16.msra.mxu0 0
    %318 = vmatprep.subr.bf16.mxu0 0
    %319 = vmatpush1.bf16.msra.mxu0 0
    %320 = vmatprep.mubr.bf16.mxu0 0
    %321 = vmatmul.mubr.bf16.gmra.mrb[0].mxu0 %v228
    %v322 = vpop.f32.mrb[0].mxu0
    %v323 = vadd.f32 %v236, %v322
    %v324 = vpop.f32.mrb[0].mxu0
    %v325 = vpop.f32.mrb[0].mxu0
    %v326 = vadd.f32 %v237, %v325
    %v327 = vpop.f32.mrb[0].mxu0
    %328 = vmatprep.mubr.bf16.mxu0 0
    %329 = vmatmul.mubr.bf16.gmra.mrb[0].mxu0 %v229
    %v330 = vpop.f32.mrb[0].mxu0
    %v331 = vadd.f32 %v238, %v330
    %v332 = vpop.f32.mrb[0].mxu0
    %v333 = vpop.f32.mrb[0].mxu0
    %v334 = vadd.f32 %v239, %v333
    %v335 = vpop.f32.mrb[0].mxu0
    %336 = vdwg.mxu0
    %337 = vst [vmem:[#allocation8] sm:$0xff] %v323
    %338 = vst [vmem:[#allocation8 + $0x8] sm:$0xff] %v326
    %339 = vst [vmem:[#allocation8 + $0x10] sm:$0xff] %v331
    %340 = vst [vmem:[#allocation8 + $0x18] sm:$0xff] %v334
    // Predicated region
    $region30: #{tpu_custom_call.1} parent=1 // pred_check
      _
    $region31: #{tpu_custom_call.1} parent=1 // pred_check_branch
      %342 = sbr.rel (0) target = $region33
    $region32: #{tpu_custom_call.1} parent=1 // pred_region
      %s344 = ssub.s32 512, 512
      %345 = vsyncadd [#allocation4], %s344
      %s346 = sshll.u32 [#allocation8], 4
      %s347 = int_to_ptr.vmem [resolvable:$true] %s346
      %352 = dma.vmem_to_hbm [thread:$0]  %s347, 512, %s4, [#allocation4], 128, 128, 8
    $region33: #{tpu_custom_call.1} parent=1 // pred_fallthru
      _
    // Predicated region
    $region34: #{tpu_custom_call.1} parent=1 // pred_check
      _
    $region35: #{tpu_custom_call.1} parent=1 // pred_check_branch
      %354 = sbr.rel (0) target = $region37
    $region36: #{tpu_custom_call.1} parent=1 // pred_region
      %355 = dma.done [#allocation4], 512
    $region37: #{tpu_custom_call.1} parent=1 // pred_fallthru
      _
    %356 = vsyncpa [#allocation3], 1
    %357 = vsyncpa [#allocation6], 1
    %358 = vsyncpa [#allocation4], 1

</llo_original>
